<compile_context>
chip_gen: v5e
topology: v5e:2x2
jax: 0.10.0
libtpu: 0.0.40
codegen_flags: <defaults>
</compile_context>

<pallas_src>
import functools

import jax
import jax.numpy as jnp
from jax import lax
from jax.experimental import pallas as pl
from jax.experimental.pallas import tpu as pltpu

# Small, module-consistent sizes (module defaults: spatial=128, model_dim=512,
# middle=512 — scaled down here; toy sizes are correctness-only).
B = 2      # batch
C = 8      # model_dim (channel axis)
S = 16     # spatial_size
M = 32     # middle_ss
EPS = 1e-5


def _mha_ca_kernel(q_ref, k_ref, v_ref,
                   wq_ref, bq_ref, wk_ref, bk_ref, wv_ref, bv_ref,
                   wf_ref, bf_ref, gamma_ref, beta_ref,
                   out_ref, attn_ref,
                   sum_ref, sumsq_ref,
                   *, batch, spatial, middle):
    """One (phase, batch) grid step.

    Per-step ref shapes:
      q_ref/k_ref/v_ref (C, S)   wq/wk/wv_ref (S, M) bf16   wf_ref (M, S) bf16
      bq/bk/bv_ref (1, M)        bf_ref (1, S)
      gamma_ref/beta_ref (C, 1)
      out_ref (C, S)   attn_ref (C, C)
      sum_ref/sumsq_ref (C, 1)   -- persistent per-channel BN accumulators
    """
    phase = pl.program_id(0)
    bi = pl.program_id(1)

    # --- linear_q / linear_k / linear_v: bf16 operands, f32 accumulation ------
    qp = jnp.dot(q_ref[...].astype(jnp.bfloat16), wq_ref[...],
                 preferred_element_type=jnp.float32) + bq_ref[...]     # (C, M)
    kp = jnp.dot(k_ref[...].astype(jnp.bfloat16), wk_ref[...],
                 preferred_element_type=jnp.float32) + bk_ref[...]
    vp = jnp.dot(v_ref[...].astype(jnp.bfloat16), wv_ref[...],
                 preferred_element_type=jnp.float32) + bv_ref[...]

    # --- scaled dot-product attention over the channel axis -------------------
    scale = float(middle) ** -0.5        # key.size(-1) ** -0.5 on projected key
    scores = lax.dot_general(qp.astype(jnp.bfloat16), kp.astype(jnp.bfloat16),
                             (((1,), (1,)), ((), ())),
                             preferred_element_type=jnp.float32) * scale  # (C, C)
    scores = scores - jnp.max(scores, axis=-1, keepdims=True)
    p = jnp.exp(scores)
    denom = jnp.sum(p, axis=-1, keepdims=True)
    r = pl.reciprocal(denom, approx=True)        # EUP slot, no VALU divide
    r = r * (2.0 - denom * r)                    # one Newton step -> f32 accurate
    attn = p * r                                 # (C, C)
    attn_ref[...] = attn                         # identical in both phases

    ctx = jnp.dot(attn.astype(jnp.bfloat16), vp.astype(jnp.bfloat16),
                  preferred_element_type=jnp.float32)                   # (C, M)

    # --- linear_final ----------------------------------------------------------
    pre_bn = jnp.dot(ctx.astype(jnp.bfloat16), wf_ref[...],
                     preferred_element_type=jnp.float32) + bf_ref[...]  # (C, S)

    # --- phase 0: accumulate per-channel batch statistics ----------------------
    @pl.when(jnp.logical_and(phase == 0, bi == 0))
    def _():
        sum_ref[...] = jnp.zeros_like(sum_ref)
        sumsq_ref[...] = jnp.zeros_like(sumsq_ref)

    @pl.when(phase == 0)
    def _():
        sum_ref[...] += jnp.sum(pre_bn, axis=1, keepdims=True)
        sumsq_ref[...] += jnp.sum(pre_bn * pre_bn, axis=1, keepdims=True)
        out_ref[...] = pre_bn            # placeholder; overwritten in phase 1

    # --- phase 1: BatchNorm1d (batch stats) + ReLU + residual ------------------
    @pl.when(phase == 1)
    def _():
        inv_n = 1.0 / float(batch * spatial)
        mean = sum_ref[...] * inv_n                        # (C, 1)
        var = sumsq_ref[...] * inv_n - mean * mean         # biased var (training BN)
        inv_std = lax.rsqrt(var + EPS)
        y = (pre_bn - mean) * inv_std * gamma_ref[...] + beta_ref[...]
        y = jnp.maximum(y, 0.0)                            # ReLU
        out_ref[...] = v_ref[...] + y                      # residual = value


def prepare_params(params):
    """One-time layout/dtype prep (outside the per-call hot path)."""
    wq, bq, wk, bk, wv, bv, wf, bf, gamma, beta = params
    m, s = wq.shape
    c = gamma.shape[0]
    bf16 = jnp.bfloat16
    return (jnp.asarray(wq.T, bf16), bq.reshape(1, m).astype(jnp.float32),
            jnp.asarray(wk.T, bf16), bk.reshape(1, m).astype(jnp.float32),
            jnp.asarray(wv.T, bf16), bv.reshape(1, m).astype(jnp.float32),
            jnp.asarray(wf.T, bf16), bf.reshape(1, s).astype(jnp.float32),
            gamma.reshape(c, 1).astype(jnp.float32),
            beta.reshape(c, 1).astype(jnp.float32))


@jax.jit
def multi_head_attention_ca(query, key, value, prepared):
    """query/key/value: (B, C, S) f32. Returns (output (B,C,S), attention (B,C,C))."""
    wq_t, bq_r, wk_t, bk_r, wv_t, bv_r, wf_t, bf_r, gamma_c, beta_c = prepared
    batch, chan, spatial = query.shape
    middle = wq_t.shape[1]

    kernel = functools.partial(_mha_ca_kernel, batch=batch, spatial=spatial,
                               middle=middle)

    per_batch = lambda ph, b: (b, 0, 0)      # phase 1 revisits the same block
    whole = lambda ph, b: (0, 0)             # weights/biases: resident, one DMA

    flops = 2 * batch * (2 * chan * middle * (4 * spatial + 2 * chan))
    bytes_accessed = (2 * 3 * batch * chan * spatial * 4          # q/k/v, 2 phases
                      + (3 * spatial * middle + middle * spatial) * 2   # bf16 weights
                      + 2 * batch * chan * spatial * 4            # out written twice
                      + 2 * batch * chan * chan * 4)              # attn written twice

    out, attn = pl.pallas_call(
        kernel,
        out_shape=(jax.ShapeDtypeStruct((batch, chan, spatial), jnp.float32),
                   jax.ShapeDtypeStruct((batch, chan, chan), jnp.float32)),
        grid_spec=pltpu.PrefetchScalarGridSpec(
            num_scalar_prefetch=0,
            grid=(2, batch),                 # (phase, batch); batch innermost
            in_specs=[
                pl.BlockSpec((None, chan, spatial), per_batch),   # query
                pl.BlockSpec((None, chan, spatial), per_batch),   # key
                pl.BlockSpec((None, chan, spatial), per_batch),   # value (+ residual)
                pl.BlockSpec((spatial, middle), whole),           # Wq^T (bf16)
                pl.BlockSpec((1, middle), whole),                 # bq
                pl.BlockSpec((spatial, middle), whole),           # Wk^T (bf16)
                pl.BlockSpec((1, middle), whole),                 # bk
                pl.BlockSpec((spatial, middle), whole),           # Wv^T (bf16)
                pl.BlockSpec((1, middle), whole),                 # bv
                pl.BlockSpec((middle, spatial), whole),           # Wf^T (bf16)
                pl.BlockSpec((1, spatial), whole),                # bf
                pl.BlockSpec((chan, 1), whole),                   # gamma
                pl.BlockSpec((chan, 1), whole),                   # beta
            ],
            out_specs=(pl.BlockSpec((None, chan, spatial), per_batch),
                       pl.BlockSpec((None, chan, chan), per_batch)),
            scratch_shapes=[pltpu.VMEM((chan, 1), jnp.float32),   # BN sum
                            pltpu.VMEM((chan, 1), jnp.float32)],  # BN sum of squares
        ),
        # Both axes "arbitrary": the phase axis is sequential by construction and
        # batch-stats BN couples the batch axis (see TODO at top for v7x split).
        compiler_params=pltpu.CompilerParams(
            dimension_semantics=("arbitrary", "arbitrary")),
        cost_estimate=pl.CostEstimate(flops=flops,
                                      transcendentals=2 * batch * chan * chan,
                                      bytes_accessed=bytes_accessed),
    )(query, key, value, wq_t, bq_r, wk_t, bk_r, wv_t, bv_r, wf_t, bf_r,
      gamma_c, beta_c)
    return out, attn


def _ref_forward(query, key, value, params):
    """Pure-JAX f32 reference mirroring the PyTorch forward."""
    wq, bq, wk, bk, wv, bv, wf, bf, gamma, beta = params
    q = query @ wq.T + bq
    k = key @ wk.T + bk
    v = value @ wv.T + bv
    scale = k.shape[-1] ** -0.5
    scores = jnp.einsum('bim,bjm->bij', q, k) * scale
    attn = jax.nn.softmax(scores, axis=-1)
    ctx = jnp.einsum('bij,bjm->bim', attn, v)
    out = ctx @ wf.T + bf
    mean = out.mean(axis=(0, 2), keepdims=True)
    var = out.var(axis=(0, 2), keepdims=True)
    y = (out - mean) / jnp.sqrt(var + EPS) * gamma.reshape(1, -1, 1) + beta.reshape(1, -1, 1)
    y = jnp.maximum(y, 0.0)
    return value + y, attn


def _init_params(key):
    ks = jax.random.split(key, 8)

    def lin(k, fan_out, fan_in):
        bound = 1.0 / jnp.sqrt(fan_in)
        kw, kb = jax.random.split(k)
        w = jax.random.uniform(kw, (fan_out, fan_in), jnp.float32, -bound, bound)
        b = jax.random.uniform(kb, (fan_out,), jnp.float32, -bound, bound)
        return w, b

    wq, bq = lin(ks[0], M, S)
    wk, bk = lin(ks[1], M, S)
    wv, bv = lin(ks[2], M, S)
    wf, bf = lin(ks[3], S, M)
    gamma = jnp.ones((C,), jnp.float32)    # BatchNorm1d default weight
    beta = jnp.zeros((C,), jnp.float32)    # BatchNorm1d default bias
    return (wq, bq, wk, bk, wv, bv, wf, bf, gamma, beta)


if __name__ == "__main__":
    root = jax.random.PRNGKey(0)
    kq, kk, kv, kp = jax.random.split(root, 4)
    query = jax.random.normal(kq, (B, C, S), jnp.float32)
    key = jax.random.normal(kk, (B, C, S), jnp.float32)
    value = jax.random.normal(kv, (B, C, S), jnp.float32)
    params = _init_params(kp)
    prepared = prepare_params(params)        # one-time weight prep, outside jit

    out, attn = multi_head_attention_ca(query, key, value, prepared)
    out, attn = jax.block_until_ready((out, attn))

    ref_out, ref_attn = _ref_forward(query, key, value, params)
    # bf16 MXU operands (f32 accumulation) -> tolerances relaxed vs the f32 ref.
    assert jnp.allclose(attn, ref_attn, atol=3e-2, rtol=3e-2), "attention mismatch"
    assert jnp.allclose(out, ref_out, atol=8e-2, rtol=5e-2), "output mismatch"

    print("KERNEL_OK")
</pallas_src>

<mosaic_0001>
module attributes {stable_mosaic.version = 11 : i64} {
  func.func @_mha_ca_kernel(%arg0: i32, %arg1: i32, %arg2: memref<1x8x16xf32, #tpu.memory_space<vmem>>, %arg3: memref<1x8x16xf32, #tpu.memory_space<vmem>>, %arg4: memref<1x8x16xf32, #tpu.memory_space<vmem>>, %arg5: memref<16x32xbf16, #tpu.memory_space<vmem>>, %arg6: memref<1x32xf32, #tpu.memory_space<vmem>>, %arg7: memref<16x32xbf16, #tpu.memory_space<vmem>>, %arg8: memref<1x32xf32, #tpu.memory_space<vmem>>, %arg9: memref<16x32xbf16, #tpu.memory_space<vmem>>, %arg10: memref<1x32xf32, #tpu.memory_space<vmem>>, %arg11: memref<32x16xbf16, #tpu.memory_space<vmem>>, %arg12: memref<1x16xf32, #tpu.memory_space<vmem>>, %arg13: memref<8x1xf32, #tpu.memory_space<vmem>>, %arg14: memref<8x1xf32, #tpu.memory_space<vmem>>, %arg15: memref<1x8x16xf32, #tpu.memory_space<vmem>>, %arg16: memref<1x8x8xf32, #tpu.memory_space<vmem>>, %arg17: memref<8x1xf32, #tpu.memory_space<vmem>>, %arg18: memref<8x1xf32, #tpu.memory_space<vmem>>) attributes {dimension_semantics = [#tpu.dimension_semantics<arbitrary>, #tpu.dimension_semantics<arbitrary>], iteration_bounds = array<i64: 2, 2>, scalar_prefetch = 0 : i64, scratch_operands = 2 : i64, tpu.core_type = #tpu.core_type<tc>, window_params = [{transform_indices = @transform_0, window_bounds = array<i64: 1, 8, 16>}, {transform_indices = @transform_1, window_bounds = array<i64: 1, 8, 16>}, {transform_indices = @transform_2, window_bounds = array<i64: 1, 8, 16>}, {pipeline_mode = #tpu.pipeline_mode<synchronous>, transform_indices = @transform_3, window_bounds = array<i64: 16, 32>}, {pipeline_mode = #tpu.pipeline_mode<synchronous>, transform_indices = @transform_4, window_bounds = array<i64: 1, 32>}, {pipeline_mode = #tpu.pipeline_mode<synchronous>, transform_indices = @transform_5, window_bounds = array<i64: 16, 32>}, {pipeline_mode = #tpu.pipeline_mode<synchronous>, transform_indices = @transform_6, window_bounds = array<i64: 1, 32>}, {pipeline_mode = #tpu.pipeline_mode<synchronous>, transform_indices = @transform_7, window_bounds = array<i64: 16, 32>}, {pipeline_mode = #tpu.pipeline_mode<synchronous>, transform_indices = @transform_8, window_bounds = array<i64: 1, 32>}, {pipeline_mode = #tpu.pipeline_mode<synchronous>, transform_indices = @transform_9, window_bounds = array<i64: 32, 16>}, {pipeline_mode = #tpu.pipeline_mode<synchronous>, transform_indices = @transform_10, window_bounds = array<i64: 1, 16>}, {pipeline_mode = #tpu.pipeline_mode<synchronous>, transform_indices = @transform_11, window_bounds = array<i64: 8, 1>}, {pipeline_mode = #tpu.pipeline_mode<synchronous>, transform_indices = @transform_12, window_bounds = array<i64: 8, 1>}, {transform_indices = @transform_13, window_bounds = array<i64: 1, 8, 16>}, {transform_indices = @transform_14, window_bounds = array<i64: 1, 8, 8>}]} {
    %c0 = arith.constant 0 : index
    %c0_0 = arith.constant 0 : index
    %c0_1 = arith.constant 0 : index
    %0 = vector.load %arg2[%c0, %c0_0, %c0_1] : memref<1x8x16xf32, #tpu.memory_space<vmem>>, vector<1x8x16xf32>
    %1 = vector.shape_cast %0 : vector<1x8x16xf32> to vector<8x16xf32>
    %2 = arith.truncf %1 : vector<8x16xf32> to vector<8x16xbf16>
    %c0_2 = arith.constant 0 : index
    %c0_3 = arith.constant 0 : index
    %3 = vector.load %arg5[%c0_2, %c0_3] : memref<16x32xbf16, #tpu.memory_space<vmem>>, vector<16x32xbf16>
    %cst = arith.constant dense<0.000000e+00> : vector<8x32xf32>
    %4 = tpu.matmul %2, %3, %cst {dimension_numbers = #tpu.dot_dimension_numbers<[1], [0], [0], [1], [0, 0, 1, 1], [], []>} : vector<8x16xbf16>, vector<16x32xbf16>, vector<8x32xf32> -> vector<8x32xf32>
    %c0_4 = arith.constant 0 : index
    %c0_5 = arith.constant 0 : index
    %5 = vector.load %arg6[%c0_4, %c0_5] : memref<1x32xf32, #tpu.memory_space<vmem>>, vector<1x32xf32>
    %6 = vector.broadcast %5 : vector<1x32xf32> to vector<8x32xf32>
    %7 = arith.addf %4, %6 : vector<8x32xf32>
    %c0_6 = arith.constant 0 : index
    %c0_7 = arith.constant 0 : index
    %c0_8 = arith.constant 0 : index
    %8 = vector.load %arg3[%c0_6, %c0_7, %c0_8] : memref<1x8x16xf32, #tpu.memory_space<vmem>>, vector<1x8x16xf32>
    %9 = vector.shape_cast %8 : vector<1x8x16xf32> to vector<8x16xf32>
    %10 = arith.truncf %9 : vector<8x16xf32> to vector<8x16xbf16>
    %c0_9 = arith.constant 0 : index
    %c0_10 = arith.constant 0 : index
    %11 = vector.load %arg7[%c0_9, %c0_10] : memref<16x32xbf16, #tpu.memory_space<vmem>>, vector<16x32xbf16>
    %cst_11 = arith.constant dense<0.000000e+00> : vector<8x32xf32>
    %12 = tpu.matmul %10, %11, %cst_11 {dimension_numbers = #tpu.dot_dimension_numbers<[1], [0], [0], [1], [0, 0, 1, 1], [], []>} : vector<8x16xbf16>, vector<16x32xbf16>, vector<8x32xf32> -> vector<8x32xf32>
    %c0_12 = arith.constant 0 : index
    %c0_13 = arith.constant 0 : index
    %13 = vector.load %arg8[%c0_12, %c0_13] : memref<1x32xf32, #tpu.memory_space<vmem>>, vector<1x32xf32>
    %14 = vector.broadcast %13 : vector<1x32xf32> to vector<8x32xf32>
    %15 = arith.addf %12, %14 : vector<8x32xf32>
    %c0_14 = arith.constant 0 : index
    %c0_15 = arith.constant 0 : index
    %c0_16 = arith.constant 0 : index
    %16 = vector.load %arg4[%c0_14, %c0_15, %c0_16] : memref<1x8x16xf32, #tpu.memory_space<vmem>>, vector<1x8x16xf32>
    %17 = vector.shape_cast %16 : vector<1x8x16xf32> to vector<8x16xf32>
    %18 = arith.truncf %17 : vector<8x16xf32> to vector<8x16xbf16>
    %c0_17 = arith.constant 0 : index
    %c0_18 = arith.constant 0 : index
    %19 = vector.load %arg9[%c0_17, %c0_18] : memref<16x32xbf16, #tpu.memory_space<vmem>>, vector<16x32xbf16>
    %cst_19 = arith.constant dense<0.000000e+00> : vector<8x32xf32>
    %20 = tpu.matmul %18, %19, %cst_19 {dimension_numbers = #tpu.dot_dimension_numbers<[1], [0], [0], [1], [0, 0, 1, 1], [], []>} : vector<8x16xbf16>, vector<16x32xbf16>, vector<8x32xf32> -> vector<8x32xf32>
    %c0_20 = arith.constant 0 : index
    %c0_21 = arith.constant 0 : index
    %21 = vector.load %arg10[%c0_20, %c0_21] : memref<1x32xf32, #tpu.memory_space<vmem>>, vector<1x32xf32>
    %22 = vector.broadcast %21 : vector<1x32xf32> to vector<8x32xf32>
    %23 = arith.addf %20, %22 : vector<8x32xf32>
    %24 = arith.truncf %7 : vector<8x32xf32> to vector<8x32xbf16>
    %25 = arith.truncf %15 : vector<8x32xf32> to vector<8x32xbf16>
    %cst_22 = arith.constant dense<0.000000e+00> : vector<8x8xf32>
    %26 = tpu.matmul %24, %25, %cst_22 {dimension_numbers = #tpu.dot_dimension_numbers<[1], [1], [0], [0], [0, 0, 1, 0], [], []>} : vector<8x32xbf16>, vector<8x32xbf16>, vector<8x8xf32> -> vector<8x8xf32>
    %cst_23 = arith.constant 0.176776692 : f32
    %27 = vector.broadcast %cst_23 : f32 to vector<8x8xf32>
    %28 = arith.mulf %26, %27 : vector<8x8xf32>
    %cst_24 = arith.constant dense<0xFF800000> : vector<8xf32>
    %29 = vector.multi_reduction <maximumf>, %28, %cst_24 [1] : vector<8x8xf32> to vector<8xf32>
    %30 = vector.shape_cast %29 : vector<8xf32> to vector<8x1xf32>
    %31 = vector.broadcast %30 : vector<8x1xf32> to vector<8x8xf32>
    %32 = arith.subf %28, %31 : vector<8x8xf32>
    %33 = math.exp %32 : vector<8x8xf32>
    %cst_25 = arith.constant dense<0.000000e+00> : vector<8xf32>
    %34 = vector.multi_reduction <add>, %33, %cst_25 [1] : vector<8x8xf32> to vector<8xf32>
    %35 = vector.shape_cast %34 : vector<8xf32> to vector<8x1xf32>
    %36 = tpu.reciprocal %35 {approx = true} : vector<8x1xf32> -> vector<8x1xf32>
    %37 = arith.mulf %35, %36 : vector<8x1xf32>
    %cst_26 = arith.constant 2.000000e+00 : f32
    %38 = vector.broadcast %cst_26 : f32 to vector<8x1xf32>
    %39 = arith.subf %38, %37 : vector<8x1xf32>
    %40 = arith.mulf %36, %39 : vector<8x1xf32>
    %41 = vector.broadcast %40 : vector<8x1xf32> to vector<8x8xf32>
    %42 = arith.mulf %33, %41 : vector<8x8xf32>
    %c0_27 = arith.constant 0 : index
    %c0_28 = arith.constant 0 : index
    %c0_29 = arith.constant 0 : index
    %43 = vector.load %arg16[%c0_27, %c0_28, %c0_29] : memref<1x8x8xf32, #tpu.memory_space<vmem>>, vector<1x8x8xf32>
    %44 = vector.shape_cast %43 : vector<1x8x8xf32> to vector<8x8xf32>
    %45 = vector.shape_cast %42 : vector<8x8xf32> to vector<1x8x8xf32>
    tpu.vector_store %arg16[%c0_27, %c0_28, %c0_29], %45 {strides = array<i32>} : memref<1x8x8xf32, #tpu.memory_space<vmem>>, vector<1x8x8xf32>,
    %46 = arith.truncf %42 : vector<8x8xf32> to vector<8x8xbf16>
    %47 = arith.truncf %23 : vector<8x32xf32> to vector<8x32xbf16>
    %cst_30 = arith.constant dense<0.000000e+00> : vector<8x32xf32>
    %48 = tpu.matmul %46, %47, %cst_30 {dimension_numbers = #tpu.dot_dimension_numbers<[1], [0], [0], [1], [0, 0, 1, 1], [], []>} : vector<8x8xbf16>, vector<8x32xbf16>, vector<8x32xf32> -> vector<8x32xf32>
    %49 = arith.truncf %48 : vector<8x32xf32> to vector<8x32xbf16>
    %c0_31 = arith.constant 0 : index
    %c0_32 = arith.constant 0 : index
    %50 = vector.load %arg11[%c0_31, %c0_32] : memref<32x16xbf16, #tpu.memory_space<vmem>>, vector<32x16xbf16>
    %cst_33 = arith.constant dense<0.000000e+00> : vector<8x16xf32>
    %51 = tpu.matmul %49, %50, %cst_33 {dimension_numbers = #tpu.dot_dimension_numbers<[1], [0], [0], [1], [0, 0, 1, 1], [], []>} : vector<8x32xbf16>, vector<32x16xbf16>, vector<8x16xf32> -> vector<8x16xf32>
    %c0_34 = arith.constant 0 : index
    %c0_35 = arith.constant 0 : index
    %52 = vector.load %arg12[%c0_34, %c0_35] : memref<1x16xf32, #tpu.memory_space<vmem>>, vector<1x16xf32>
    %53 = vector.broadcast %52 : vector<1x16xf32> to vector<8x16xf32>
    %54 = arith.addf %51, %53 : vector<8x16xf32>
    %c0_i32 = arith.constant 0 : i32
    %55 = arith.cmpi eq, %arg0, %c0_i32 : i32
    %c0_i32_36 = arith.constant 0 : i32
    %56 = arith.cmpi eq, %arg1, %c0_i32_36 : i32
    %57 = arith.andi %55, %56 : i1
    %58 = arith.extui %57 : i1 to i32
    %c0_i32_37 = arith.constant 0 : i32
    %59 = arith.cmpi ne, %58, %c0_i32_37 : i32
    scf.if %59 {
      %cst_41 = arith.constant 0.000000e+00 : f32
      %66 = vector.broadcast %cst_41 : f32 to vector<8x1xf32>
      %c0_42 = arith.constant 0 : index
      %c0_43 = arith.constant 0 : index
      %67 = vector.load %arg17[%c0_42, %c0_43] : memref<8x1xf32, #tpu.memory_space<vmem>>, vector<8x1xf32>
      tpu.vector_store %arg17[%c0_42, %c0_43], %66 {strides = array<i32>} : memref<8x1xf32, #tpu.memory_space<vmem>>, vector<8x1xf32>,
      %cst_44 = arith.constant 0.000000e+00 : f32
      %68 = vector.broadcast %cst_44 : f32 to vector<8x1xf32>
      %c0_45 = arith.constant 0 : index
      %c0_46 = arith.constant 0 : index
      %69 = vector.load %arg18[%c0_45, %c0_46] : memref<8x1xf32, #tpu.memory_space<vmem>>, vector<8x1xf32>
      tpu.vector_store %arg18[%c0_45, %c0_46], %68 {strides = array<i32>} : memref<8x1xf32, #tpu.memory_space<vmem>>, vector<8x1xf32>,
    } else {
    }
    %c0_i32_38 = arith.constant 0 : i32
    %60 = arith.cmpi eq, %arg0, %c0_i32_38 : i32
    %61 = arith.extui %60 : i1 to i32
    %c0_i32_39 = arith.constant 0 : i32
    %62 = arith.cmpi ne, %61, %c0_i32_39 : i32
    scf.if %62 {
      %c0_41 = arith.constant 0 : index
      %c0_42 = arith.constant 0 : index
      %66 = vector.load %arg17[%c0_41, %c0_42] : memref<8x1xf32, #tpu.memory_space<vmem>>, vector<8x1xf32>
      %cst_43 = arith.constant dense<0.000000e+00> : vector<8xf32>
      %67 = vector.multi_reduction <add>, %54, %cst_43 [1] : vector<8x16xf32> to vector<8xf32>
      %68 = vector.shape_cast %67 : vector<8xf32> to vector<8x1xf32>
      %69 = arith.addf %66, %68 : vector<8x1xf32>
      %c0_44 = arith.constant 0 : index
      %c0_45 = arith.constant 0 : index
      %70 = vector.load %arg17[%c0_44, %c0_45] : memref<8x1xf32, #tpu.memory_space<vmem>>, vector<8x1xf32>
      tpu.vector_store %arg17[%c0_44, %c0_45], %69 {strides = array<i32>} : memref<8x1xf32, #tpu.memory_space<vmem>>, vector<8x1xf32>,
      %c0_46 = arith.constant 0 : index
      %c0_47 = arith.constant 0 : index
      %71 = vector.load %arg18[%c0_46, %c0_47] : memref<8x1xf32, #tpu.memory_space<vmem>>, vector<8x1xf32>
      %72 = arith.mulf %54, %54 : vector<8x16xf32>
      %cst_48 = arith.constant dense<0.000000e+00> : vector<8xf32>
      %73 = vector.multi_reduction <add>, %72, %cst_48 [1] : vector<8x16xf32> to vector<8xf32>
      %74 = vector.shape_cast %73 : vector<8xf32> to vector<8x1xf32>
      %75 = arith.addf %71, %74 : vector<8x1xf32>
      %c0_49 = arith.constant 0 : index
      %c0_50 = arith.constant 0 : index
      %76 = vector.load %arg18[%c0_49, %c0_50] : memref<8x1xf32, #tpu.memory_space<vmem>>, vector<8x1xf32>
      tpu.vector_store %arg18[%c0_49, %c0_50], %75 {strides = array<i32>} : memref<8x1xf32, #tpu.memory_space<vmem>>, vector<8x1xf32>,
      %c0_51 = arith.constant 0 : index
      %c0_52 = arith.constant 0 : index
      %c0_53 = arith.constant 0 : index
      %77 = vector.load %arg15[%c0_51, %c0_52, %c0_53] : memref<1x8x16xf32, #tpu.memory_space<vmem>>, vector<1x8x16xf32>
      %78 = vector.shape_cast %77 : vector<1x8x16xf32> to vector<8x16xf32>
      %79 = vector.shape_cast %54 : vector<8x16xf32> to vector<1x8x16xf32>
      tpu.vector_store %arg15[%c0_51, %c0_52, %c0_53], %79 {strides = array<i32>} : memref<1x8x16xf32, #tpu.memory_space<vmem>>, vector<1x8x16xf32>,
    } else {
    }
    %c1_i32 = arith.constant 1 : i32
    %63 = arith.cmpi eq, %arg0, %c1_i32 : i32
    %64 = arith.extui %63 : i1 to i32
    %c0_i32_40 = arith.constant 0 : i32
    %65 = arith.cmpi ne, %64, %c0_i32_40 : i32
    scf.if %65 {
      %c0_41 = arith.constant 0 : index
      %c0_42 = arith.constant 0 : index
      %66 = vector.load %arg17[%c0_41, %c0_42] : memref<8x1xf32, #tpu.memory_space<vmem>>, vector<8x1xf32>
      %cst_43 = arith.constant 3.125000e-02 : f32
      %67 = vector.broadcast %cst_43 : f32 to vector<8x1xf32>
      %68 = arith.mulf %66, %67 : vector<8x1xf32>
      %c0_44 = arith.constant 0 : index
      %c0_45 = arith.constant 0 : index
      %69 = vector.load %arg18[%c0_44, %c0_45] : memref<8x1xf32, #tpu.memory_space<vmem>>, vector<8x1xf32>
      %cst_46 = arith.constant 3.125000e-02 : f32
      %70 = vector.broadcast %cst_46 : f32 to vector<8x1xf32>
      %71 = arith.mulf %69, %70 : vector<8x1xf32>
      %72 = arith.mulf %68, %68 : vector<8x1xf32>
      %73 = arith.subf %71, %72 : vector<8x1xf32>
      %cst_47 = arith.constant 9.99999974E-6 : f32
      %74 = vector.broadcast %cst_47 : f32 to vector<8x1xf32>
      %75 = arith.addf %73, %74 : vector<8x1xf32>
      %76 = math.rsqrt %75 : vector<8x1xf32>
      %77 = vector.broadcast %68 : vector<8x1xf32> to vector<8x16xf32>
      %78 = arith.subf %54, %77 : vector<8x16xf32>
      %79 = vector.broadcast %76 : vector<8x1xf32> to vector<8x16xf32>
      %80 = arith.mulf %78, %79 : vector<8x16xf32>
      %c0_48 = arith.constant 0 : index
      %c0_49 = arith.constant 0 : index
      %81 = vector.load %arg13[%c0_48, %c0_49] : memref<8x1xf32, #tpu.memory_space<vmem>>, vector<8x1xf32>
      %82 = vector.broadcast %81 : vector<8x1xf32> to vector<8x16xf32>
      %83 = arith.mulf %80, %82 : vector<8x16xf32>
      %c0_50 = arith.constant 0 : index
      %c0_51 = arith.constant 0 : index
      %84 = vector.load %arg14[%c0_50, %c0_51] : memref<8x1xf32, #tpu.memory_space<vmem>>, vector<8x1xf32>
      %85 = vector.broadcast %84 : vector<8x1xf32> to vector<8x16xf32>
      %86 = arith.addf %83, %85 : vector<8x16xf32>
      %cst_52 = arith.constant 0.000000e+00 : f32
      %87 = vector.broadcast %cst_52 : f32 to vector<8x16xf32>
      %88 = arith.maximumf %86, %87 : vector<8x16xf32>
      %c0_53 = arith.constant 0 : index
      %c0_54 = arith.constant 0 : index
      %c0_55 = arith.constant 0 : index
      %89 = vector.load %arg4[%c0_53, %c0_54, %c0_55] : memref<1x8x16xf32, #tpu.memory_space<vmem>>, vector<1x8x16xf32>
      %90 = vector.shape_cast %89 : vector<1x8x16xf32> to vector<8x16xf32>
      %91 = arith.addf %90, %88 : vector<8x16xf32>
      %c0_56 = arith.constant 0 : index
      %c0_57 = arith.constant 0 : index
      %c0_58 = arith.constant 0 : index
      %92 = vector.load %arg15[%c0_56, %c0_57, %c0_58] : memref<1x8x16xf32, #tpu.memory_space<vmem>>, vector<1x8x16xf32>
      %93 = vector.shape_cast %92 : vector<1x8x16xf32> to vector<8x16xf32>
      %94 = vector.shape_cast %91 : vector<8x16xf32> to vector<1x8x16xf32>
      tpu.vector_store %arg15[%c0_56, %c0_57, %c0_58], %94 {strides = array<i32>} : memref<1x8x16xf32, #tpu.memory_space<vmem>>, vector<1x8x16xf32>,
    } else {
    }
    return
  }
  func.func @transform_0(%arg0: i32, %arg1: i32) -> (i32, i32, i32) {
    %c0_i32 = arith.constant 0 : i32
    %c0_i32_0 = arith.constant 0 : i32
    %c0_i32_1 = arith.constant 0 : i32
    return %arg1, %c0_i32, %c0_i32_0 : i32, i32, i32
  }
  func.func @transform_1(%arg0: i32, %arg1: i32) -> (i32, i32, i32) {
    %c0_i32 = arith.constant 0 : i32
    %c0_i32_0 = arith.constant 0 : i32
    %c0_i32_1 = arith.constant 0 : i32
    return %arg1, %c0_i32, %c0_i32_0 : i32, i32, i32
  }
  func.func @transform_2(%arg0: i32, %arg1: i32) -> (i32, i32, i32) {
    %c0_i32 = arith.constant 0 : i32
    %c0_i32_0 = arith.constant 0 : i32
    %c0_i32_1 = arith.constant 0 : i32
    return %arg1, %c0_i32, %c0_i32_0 : i32, i32, i32
  }
  func.func @transform_3(%arg0: i32, %arg1: i32) -> (i32, i32) {
    %c0_i32 = arith.constant 0 : i32
    %c0_i32_0 = arith.constant 0 : i32
    %c0_i32_1 = arith.constant 0 : i32
    return %c0_i32, %c0_i32_0 : i32, i32
  }
  func.func @transform_4(%arg0: i32, %arg1: i32) -> (i32, i32) {
    %c0_i32 = arith.constant 0 : i32
    %c0_i32_0 = arith.constant 0 : i32
    %c0_i32_1 = arith.constant 0 : i32
    return %c0_i32, %c0_i32_0 : i32, i32
  }
  func.func @transform_5(%arg0: i32, %arg1: i32) -> (i32, i32) {
    %c0_i32 = arith.constant 0 : i32
    %c0_i32_0 = arith.constant 0 : i32
    %c0_i32_1 = arith.constant 0 : i32
    return %c0_i32, %c0_i32_0 : i32, i32
  }
  func.func @transform_6(%arg0: i32, %arg1: i32) -> (i32, i32) {
    %c0_i32 = arith.constant 0 : i32
    %c0_i32_0 = arith.constant 0 : i32
    %c0_i32_1 = arith.constant 0 : i32
    return %c0_i32, %c0_i32_0 : i32, i32
  }
  func.func @transform_7(%arg0: i32, %arg1: i32) -> (i32, i32) {
    %c0_i32 = arith.constant 0 : i32
    %c0_i32_0 = arith.constant 0 : i32
    %c0_i32_1 = arith.constant 0 : i32
    return %c0_i32, %c0_i32_0 : i32, i32
  }
  func.func @transform_8(%arg0: i32, %arg1: i32) -> (i32, i32) {
    %c0_i32 = arith.constant 0 : i32
    %c0_i32_0 = arith.constant 0 : i32
    %c0_i32_1 = arith.constant 0 : i32
    return %c0_i32, %c0_i32_0 : i32, i32
  }
  func.func @transform_9(%arg0: i32, %arg1: i32) -> (i32, i32) {
    %c0_i32 = arith.constant 0 : i32
    %c0_i32_0 = arith.constant 0 : i32
    %c0_i32_1 = arith.constant 0 : i32
    return %c0_i32, %c0_i32_0 : i32, i32
  }
  func.func @transform_10(%arg0: i32, %arg1: i32) -> (i32, i32) {
    %c0_i32 = arith.constant 0 : i32
    %c0_i32_0 = arith.constant 0 : i32
    %c0_i32_1 = arith.constant 0 : i32
    return %c0_i32, %c0_i32_0 : i32, i32
  }
  func.func @transform_11(%arg0: i32, %arg1: i32) -> (i32, i32) {
    %c0_i32 = arith.constant 0 : i32
    %c0_i32_0 = arith.constant 0 : i32
    %c0_i32_1 = arith.constant 0 : i32
    return %c0_i32, %c0_i32_0 : i32, i32
  }
  func.func @transform_12(%arg0: i32, %arg1: i32) -> (i32, i32) {
    %c0_i32 = arith.constant 0 : i32
    %c0_i32_0 = arith.constant 0 : i32
    %c0_i32_1 = arith.constant 0 : i32
    return %c0_i32, %c0_i32_0 : i32, i32
  }
  func.func @transform_13(%arg0: i32, %arg1: i32) -> (i32, i32, i32) {
    %c0_i32 = arith.constant 0 : i32
    %c0_i32_0 = arith.constant 0 : i32
    %c0_i32_1 = arith.constant 0 : i32
    return %arg1, %c0_i32, %c0_i32_0 : i32, i32, i32
  }
  func.func @transform_14(%arg0: i32, %arg1: i32) -> (i32, i32, i32) {
    %c0_i32 = arith.constant 0 : i32
    %c0_i32_0 = arith.constant 0 : i32
    %c0_i32_1 = arith.constant 0 : i32
    return %arg1, %c0_i32, %c0_i32_0 : i32, i32, i32
  }
}

</mosaic_0001>

<llo_original>
// kernel: multi_head_attention_ca.1
$region0: #{multi_head_attention_ca.1}
  #allocation0 [shape = 'u32[]', space=smem, size = 0x4, offset = 0x4, fixed_abs, tag = 'smem constant byte address 0x4 - core index']
  #allocation1 [shape = 'u32[72,128]{1,0:T(1,128)}', space=vmem, size = 0x9000, scoped, tag = 'internal scratch']
  #allocation2 [shape = 'f32[8,1]{1,0:T(8,128)}', space=vmem, size = 0x1000, scoped, tag = 'scratch operand']
  #allocation3 [shape = 'f32[8,1]{1,0:T(8,128)}', space=vmem, size = 0x1000, scoped, tag = 'scratch operand']
  %s0 = inlined_call_operand.vmem [shape: f32[2,8,16], index: 0, kind: input, shape index: {}]
  %s1 = inlined_call_operand.vmem [shape: f32[2,8,16], index: 1, kind: input, shape index: {}]
  %s2 = inlined_call_operand.hbm [shape: f32[2,8,16], index: 2, kind: input, shape index: {}]
  %s3 = inlined_call_operand.hbm [shape: bf16[16,32], index: 3, kind: input, shape index: {}]
  %s4 = inlined_call_operand.hbm [shape: f32[1,32], index: 4, kind: input, shape index: {}]
  %s5 = inlined_call_operand.hbm [shape: bf16[16,32], index: 5, kind: input, shape index: {}]
  %s6 = inlined_call_operand.hbm [shape: f32[1,32], index: 6, kind: input, shape index: {}]
  %s7 = inlined_call_operand.vmem [shape: bf16[16,32], index: 7, kind: input, shape index: {}]
  %s8 = inlined_call_operand.hbm [shape: f32[1,32], index: 8, kind: input, shape index: {}]
  %s9 = inlined_call_operand.vmem [shape: bf16[32,16], index: 9, kind: input, shape index: {}]
  %s10 = inlined_call_operand.vmem [shape: f32[1,16], index: 10, kind: input, shape index: {}]
  %s11 = inlined_call_operand.vmem [shape: f32[8,1], index: 11, kind: input, shape index: {}]
  %s12 = inlined_call_operand.vmem [shape: f32[8,1], index: 12, kind: input, shape index: {}]
  %s13 = inlined_call_operand.hbm [shape: f32[2,8,16], index: 13, kind: output, shape index: {0}]
  %s14 = inlined_call_operand.hbm [shape: f32[2,8,8], index: 14, kind: output, shape index: {1}]
  %15 = xla_tuple %s13, %s14
  %s16 = sld [smem:[#allocation0]]
  $region129: #{multi_head_attention_ca.1} parent=0
    _
  %s18 = ssub.s32 1, %s16
  %s19 = scalar_select 0, %s18, %s16
  $region1: #{multi_head_attention_ca.1} parent=0
    #allocation4 [shape = 'u8[8192]{0}', space=vmem, size = 0x2000, scoped, tag = 'input window, operand 2']
    #allocation5 [shape = 's32[2]{0}', space=sflag, size = 0x8, scoped, tag = 'scoped memory for multi_head_attention_ca.1']
    #allocation6 [shape = 's32[2]{0}', space=sflag, size = 0x8, scoped, tag = 'scoped memory for multi_head_attention_ca.1']
    #allocation7 [shape = 'u8[4096]{0}', space=vmem, size = 0x1000, scoped, tag = 'input window, operand 3, single buffered']
    #allocation8 [shape = 's32[1]{0}', space=sflag, size = 0x4, scoped, tag = 'scoped memory for multi_head_attention_ca.1']
    #allocation9 [shape = 'u8[512]{0}', space=vmem, size = 0x400, scoped, tag = 'input window, operand 4, single buffered']
    #allocation10 [shape = 'u8[4096]{0}', space=vmem, size = 0x1000, scoped, tag = 'input window, operand 5, single buffered']
    #allocation11 [shape = 's32[1]{0}', space=sflag, size = 0x4, scoped, tag = 'scoped memory for multi_head_attention_ca.1']
    #allocation12 [shape = 'u8[512]{0}', space=vmem, size = 0x400, scoped, tag = 'input window, operand 6, single buffered']
    #allocation13 [shape = 'u8[512]{0}', space=vmem, size = 0x400, scoped, tag = 'input window, operand 8, single buffered']
    #allocation14 [shape = 's32[1]{0}', space=sflag, size = 0x4, scoped, tag = 'scoped memory for multi_head_attention_ca.1']
    #allocation15 [shape = 'u8[8192]{0}', space=vmem, size = 0x2000, scoped, tag = 'output window, operand 0']
    #allocation16 [shape = 'u8[8192]{0}', space=vmem, size = 0x2000, scoped, tag = 'output window, operand 1']
    #allocation17 [shape = 's32[2]{0}', space=sflag, size = 0x8, scoped, tag = 'scoped memory for multi_head_attention_ca.1']
    %20 = vsyncpa [#allocation5], 0
    %s21 = scalar_lea.sflag [#allocation5], 1
    %22 = vsyncpa %s21, 0
    %23 = vsyncpa [#allocation8], 0
    %24 = vsyncpa [#allocation11], 0
    %25 = vsyncpa [#allocation14], 0
    %26 = vsyncpa [#allocation6], 0
    %s27 = scalar_lea.sflag [#allocation6], 1
    %28 = vsyncpa %s27, 0
    %29 = vsyncpa [#allocation17], 0
    %s30 = scalar_lea.sflag [#allocation17], 1
    %31 = vsyncpa %s30, 0
    loop: start=0, step=1, limit=6
    $region2: #{multi_head_attention_ca.1} parent=1 // loop_pre_header
      _
    $region3: #{multi_head_attention_ca.1} parent=1 // loop_header
      %s33 = sphi 0, %s37
      %p34 = scmp.ge.s32.totalorder %s33, 6
      %s40 = sphi 0, %s52
      %s41 = sphi 0, %s48
      %s42 = sphi 0, %s40
      %s43 = sphi 0, %s41
      %s44 = sphi 0, %s42
      %s45 = sphi 0, %s43
      %s55 = sphi 0, %s57
      %s58 = sphi 0, %s55
      %s59 = sphi 0, %s58
      %s75 = sphi 0, %s59
      %s81 = sphi 0, %s83
      %s84 = sphi 0, %s81
      %s85 = sphi 0, %s84
      %s101 = sphi 0, %s85
      %s107 = sphi 0, %s109
      %s110 = sphi 0, %s107
      %s111 = sphi 0, %s110
      %s127 = sphi 0, %s111
      %s131 = sphi 0, %s131
      %s133 = sphi 0, %s131
      %s134 = sphi 0, %s133
      %s148 = sphi 0, %s134
      %s152 = sphi 0, %s152
      %s154 = sphi 0, %s152
      %s155 = sphi 0, %s154
      %s169 = sphi 0, %s155
      %s173 = sphi 0, %s173
      %s175 = sphi 0, %s173
      %s176 = sphi 0, %s175
      %s190 = sphi 0, %s176
      %s194 = sphi 0, %s194
      %s196 = sphi 0, %s194
      %s197 = sphi 0, %s196
      %s211 = sphi 0, %s197
      %s215 = sphi 0, %s215
      %s217 = sphi 0, %s215
      %s218 = sphi 0, %s217
      %s232 = sphi 0, %s218
      %s236 = sphi 0, %s236
      %s238 = sphi 0, %s236
      %s239 = sphi 0, %s238
      %s253 = sphi 0, %s239
      %s257 = sphi 0, %s257
      %s259 = sphi 0, %s257
      %s260 = sphi 0, %s259
      %s274 = sphi 0, %s260
      %s278 = sphi 0, %s278
      %s280 = sphi 0, %s278
      %s281 = sphi 0, %s280
      %s295 = sphi 0, %s281
      %s299 = sphi 0, %s299
      %s301 = sphi 0, %s299
      %s302 = sphi 0, %s301
      %s316 = sphi 0, %s302
      %s320 = sphi 0, %s320
      %s322 = sphi 0, %s320
      %s323 = sphi 0, %s322
      %s337 = sphi 0, %s323
      %s343 = sphi 0, %s345
      %s346 = sphi 0, %s343
      %s347 = sphi 0, %s346
      %s363 = sphi 0, %s347
      %s369 = sphi 0, %s371
      %s372 = sphi 0, %s369
      %s373 = sphi 0, %s372
      %s389 = sphi 0, %s373
    $region4: #{multi_head_attention_ca.1} parent=1 // loop_header_branch
      %36 = sbr.rel (%p34) target = $region8
    $region5: #{multi_head_attention_ca.1} parent=1 // loop_body
      %s38 = ssub.s32 %s33, 1
      %s39 = ssub.s32 %s33, 2
      %s46 = sadd.s32 1, %s41
      %p47 = scmp.ge.s32.totalorder %s46, 2
      %s48 = scalar_select %p47, 0, %s46
      %s49 = sadd.s32 1, %s40
      %s50 = scalar_select %p47, %s49, %s40
      %p51 = scmp.ge.s32.totalorder %s50, 2
      %s52 = scalar_select %p51, 0, %s50
      %s53 = ssub.s32 %s41, %s48
      %p54 = scmp.eq.s32.totalorder %s53, 0
      %s56 = sadd.s32 %s55, 1
      %s57 = scalar_select %p54, %s55, %s56
      %p60 = pneg %p54
      %p61 = scmp.eq.s32.totalorder %s33, 3
      %p62 = por %p60, %p61
      %p63 = scmp.ne.s32.totalorder %s55, %s58
      %p64 = scmp.eq.s32.totalorder %s33, 0
      %p65 = por %p63, %p64
      %p66 = scmp.ne.s32.totalorder %s55, %s58
      %p67 = scmp.eq.s32.totalorder %s38, 3
      %p68 = por %p66, %p67
      %p69 = scmp.ne.s32.totalorder %s58, %s59
      %p70 = scmp.eq.s32.totalorder %s38, 0
      %p71 = por %p69, %p70
      %p72 = scmp.ne.s32.totalorder %s58, %s59
      %p73 = scmp.eq.s32.totalorder %s39, 3
      %p74 = por %p72, %p73
      %p76 = scmp.ne.s32.totalorder %s59, %s75
      %p77 = scmp.eq.s32.totalorder %s39, 0
      %p78 = por %p76, %p77
      %s79 = ssub.s32 %s41, %s48
      %p80 = scmp.eq.s32.totalorder %s79, 0
      %s82 = sadd.s32 %s81, 1
      %s83 = scalar_select %p80, %s81, %s82
      %p86 = pneg %p80
      %p87 = scmp.eq.s32.totalorder %s33, 3
      %p88 = por %p86, %p87
      %p89 = scmp.ne.s32.totalorder %s81, %s84
      %p90 = scmp.eq.s32.totalorder %s33, 0
      %p91 = por %p89, %p90
      %p92 = scmp.ne.s32.totalorder %s81, %s84
      %p93 = scmp.eq.s32.totalorder %s38, 3
      %p94 = por %p92, %p93
      %p95 = scmp.ne.s32.totalorder %s84, %s85
      %p96 = scmp.eq.s32.totalorder %s38, 0
      %p97 = por %p95, %p96
      %p98 = scmp.ne.s32.totalorder %s84, %s85
      %p99 = scmp.eq.s32.totalorder %s39, 3
      %p100 = por %p98, %p99
      %p102 = scmp.ne.s32.totalorder %s85, %s101
      %p103 = scmp.eq.s32.totalorder %s39, 0
      %p104 = por %p102, %p103
      %s105 = ssub.s32 %s41, %s48
      %p106 = scmp.eq.s32.totalorder %s105, 0
      %s108 = sadd.s32 %s107, 1
      %s109 = scalar_select %p106, %s107, %s108
      %p112 = pneg %p106
      %p113 = scmp.eq.s32.totalorder %s33, 3
      %p114 = por %p112, %p113
      %p115 = scmp.ne.s32.totalorder %s107, %s110
      %p116 = scmp.eq.s32.totalorder %s33, 0
      %p117 = por %p115, %p116
      %p118 = scmp.ne.s32.totalorder %s107, %s110
      %p119 = scmp.eq.s32.totalorder %s38, 3
      %p120 = por %p118, %p119
      %p121 = scmp.ne.s32.totalorder %s110, %s111
      %p122 = scmp.eq.s32.totalorder %s38, 0
      %p123 = por %p121, %p122
      %p124 = scmp.ne.s32.totalorder %s110, %s111
      %p125 = scmp.eq.s32.totalorder %s39, 3
      %p126 = por %p124, %p125
      %p128 = scmp.ne.s32.totalorder %s111, %s127
      %p129 = scmp.eq.s32.totalorder %s39, 0
      %p130 = por %p128, %p129
      %s132 = sadd.s32 %s131, 1
      %p135 = scmp.eq.s32.totalorder %s33, 3
      %p136 = scmp.ne.s32.totalorder %s131, %s133
      %p137 = scmp.eq.s32.totalorder %s33, 0
      %p138 = por %p136, %p137
      %p139 = scmp.ne.s32.totalorder %s131, %s133
      %p140 = scmp.eq.s32.totalorder %s38, 3
      %p141 = por %p139, %p140
      %p142 = scmp.ne.s32.totalorder %s133, %s134
      %p143 = scmp.eq.s32.totalorder %s38, 0
      %p144 = por %p142, %p143
      %p145 = scmp.ne.s32.totalorder %s133, %s134
      %p146 = scmp.eq.s32.totalorder %s39, 3
      %p147 = por %p145, %p146
      %p149 = scmp.ne.s32.totalorder %s134, %s148
      %p150 = scmp.eq.s32.totalorder %s39, 0
      %p151 = por %p149, %p150
      %s153 = sadd.s32 %s152, 1
      %p156 = scmp.eq.s32.totalorder %s33, 3
      %p157 = scmp.ne.s32.totalorder %s152, %s154
      %p158 = scmp.eq.s32.totalorder %s33, 0
      %p159 = por %p157, %p158
      %p160 = scmp.ne.s32.totalorder %s152, %s154
      %p161 = scmp.eq.s32.totalorder %s38, 3
      %p162 = por %p160, %p161
      %p163 = scmp.ne.s32.totalorder %s154, %s155
      %p164 = scmp.eq.s32.totalorder %s38, 0
      %p165 = por %p163, %p164
      %p166 = scmp.ne.s32.totalorder %s154, %s155
      %p167 = scmp.eq.s32.totalorder %s39, 3
      %p168 = por %p166, %p167
      %p170 = scmp.ne.s32.totalorder %s155, %s169
      %p171 = scmp.eq.s32.totalorder %s39, 0
      %p172 = por %p170, %p171
      %s174 = sadd.s32 %s173, 1
      %p177 = scmp.eq.s32.totalorder %s33, 3
      %p178 = scmp.ne.s32.totalorder %s173, %s175
      %p179 = scmp.eq.s32.totalorder %s33, 0
      %p180 = por %p178, %p179
      %p181 = scmp.ne.s32.totalorder %s173, %s175
      %p182 = scmp.eq.s32.totalorder %s38, 3
      %p183 = por %p181, %p182
      %p184 = scmp.ne.s32.totalorder %s175, %s176
      %p185 = scmp.eq.s32.totalorder %s38, 0
      %p186 = por %p184, %p185
      %p187 = scmp.ne.s32.totalorder %s175, %s176
      %p188 = scmp.eq.s32.totalorder %s39, 3
      %p189 = por %p187, %p188
      %p191 = scmp.ne.s32.totalorder %s176, %s190
      %p192 = scmp.eq.s32.totalorder %s39, 0
      %p193 = por %p191, %p192
      %s195 = sadd.s32 %s194, 1
      %p198 = scmp.eq.s32.totalorder %s33, 3
      %p199 = scmp.ne.s32.totalorder %s194, %s196
      %p200 = scmp.eq.s32.totalorder %s33, 0
      %p201 = por %p199, %p200
      %p202 = scmp.ne.s32.totalorder %s194, %s196
      %p203 = scmp.eq.s32.totalorder %s38, 3
      %p204 = por %p202, %p203
      %p205 = scmp.ne.s32.totalorder %s196, %s197
      %p206 = scmp.eq.s32.totalorder %s38, 0
      %p207 = por %p205, %p206
      %p208 = scmp.ne.s32.totalorder %s196, %s197
      %p209 = scmp.eq.s32.totalorder %s39, 3
      %p210 = por %p208, %p209
      %p212 = scmp.ne.s32.totalorder %s197, %s211
      %p213 = scmp.eq.s32.totalorder %s39, 0
      %p214 = por %p212, %p213
      %s216 = sadd.s32 %s215, 1
      %p219 = scmp.eq.s32.totalorder %s33, 3
      %p220 = scmp.ne.s32.totalorder %s215, %s217
      %p221 = scmp.eq.s32.totalorder %s33, 0
      %p222 = por %p220, %p221
      %p223 = scmp.ne.s32.totalorder %s215, %s217
      %p224 = scmp.eq.s32.totalorder %s38, 3
      %p225 = por %p223, %p224
      %p226 = scmp.ne.s32.totalorder %s217, %s218
      %p227 = scmp.eq.s32.totalorder %s38, 0
      %p228 = por %p226, %p227
      %p229 = scmp.ne.s32.totalorder %s217, %s218
      %p230 = scmp.eq.s32.totalorder %s39, 3
      %p231 = por %p229, %p230
      %p233 = scmp.ne.s32.totalorder %s218, %s232
      %p234 = scmp.eq.s32.totalorder %s39, 0
      %p235 = por %p233, %p234
      %s237 = sadd.s32 %s236, 1
      %p240 = scmp.eq.s32.totalorder %s33, 3
      %p241 = scmp.ne.s32.totalorder %s236, %s238
      %p242 = scmp.eq.s32.totalorder %s33, 0
      %p243 = por %p241, %p242
      %p244 = scmp.ne.s32.totalorder %s236, %s238
      %p245 = scmp.eq.s32.totalorder %s38, 3
      %p246 = por %p244, %p245
      %p247 = scmp.ne.s32.totalorder %s238, %s239
      %p248 = scmp.eq.s32.totalorder %s38, 0
      %p249 = por %p247, %p248
      %p250 = scmp.ne.s32.totalorder %s238, %s239
      %p251 = scmp.eq.s32.totalorder %s39, 3
      %p252 = por %p250, %p251
      %p254 = scmp.ne.s32.totalorder %s239, %s253
      %p255 = scmp.eq.s32.totalorder %s39, 0
      %p256 = por %p254, %p255
      %s258 = sadd.s32 %s257, 1
      %p261 = scmp.eq.s32.totalorder %s33, 3
      %p262 = scmp.ne.s32.totalorder %s257, %s259
      %p263 = scmp.eq.s32.totalorder %s33, 0
      %p264 = por %p262, %p263
      %p265 = scmp.ne.s32.totalorder %s257, %s259
      %p266 = scmp.eq.s32.totalorder %s38, 3
      %p267 = por %p265, %p266
      %p268 = scmp.ne.s32.totalorder %s259, %s260
      %p269 = scmp.eq.s32.totalorder %s38, 0
      %p270 = por %p268, %p269
      %p271 = scmp.ne.s32.totalorder %s259, %s260
      %p272 = scmp.eq.s32.totalorder %s39, 3
      %p273 = por %p271, %p272
      %p275 = scmp.ne.s32.totalorder %s260, %s274
      %p276 = scmp.eq.s32.totalorder %s39, 0
      %p277 = por %p275, %p276
      %s279 = sadd.s32 %s278, 1
      %p282 = scmp.eq.s32.totalorder %s33, 3
      %p283 = scmp.ne.s32.totalorder %s278, %s280
      %p284 = scmp.eq.s32.totalorder %s33, 0
      %p285 = por %p283, %p284
      %p286 = scmp.ne.s32.totalorder %s278, %s280
      %p287 = scmp.eq.s32.totalorder %s38, 3
      %p288 = por %p286, %p287
      %p289 = scmp.ne.s32.totalorder %s280, %s281
      %p290 = scmp.eq.s32.totalorder %s38, 0
      %p291 = por %p289, %p290
      %p292 = scmp.ne.s32.totalorder %s280, %s281
      %p293 = scmp.eq.s32.totalorder %s39, 3
      %p294 = por %p292, %p293
      %p296 = scmp.ne.s32.totalorder %s281, %s295
      %p297 = scmp.eq.s32.totalorder %s39, 0
      %p298 = por %p296, %p297
      %s300 = sadd.s32 %s299, 1
      %p303 = scmp.eq.s32.totalorder %s33, 3
      %p304 = scmp.ne.s32.totalorder %s299, %s301
      %p305 = scmp.eq.s32.totalorder %s33, 0
      %p306 = por %p304, %p305
      %p307 = scmp.ne.s32.totalorder %s299, %s301
      %p308 = scmp.eq.s32.totalorder %s38, 3
      %p309 = por %p307, %p308
      %p310 = scmp.ne.s32.totalorder %s301, %s302
      %p311 = scmp.eq.s32.totalorder %s38, 0
      %p312 = por %p310, %p311
      %p313 = scmp.ne.s32.totalorder %s301, %s302
      %p314 = scmp.eq.s32.totalorder %s39, 3
      %p315 = por %p313, %p314
      %p317 = scmp.ne.s32.totalorder %s302, %s316
      %p318 = scmp.eq.s32.totalorder %s39, 0
      %p319 = por %p317, %p318
      %s321 = sadd.s32 %s320, 1
      %p324 = scmp.eq.s32.totalorder %s33, 3
      %p325 = scmp.ne.s32.totalorder %s320, %s322
      %p326 = scmp.eq.s32.totalorder %s33, 0
      %p327 = por %p325, %p326
      %p328 = scmp.ne.s32.totalorder %s320, %s322
      %p329 = scmp.eq.s32.totalorder %s38, 3
      %p330 = por %p328, %p329
      %p331 = scmp.ne.s32.totalorder %s322, %s323
      %p332 = scmp.eq.s32.totalorder %s38, 0
      %p333 = por %p331, %p332
      %p334 = scmp.ne.s32.totalorder %s322, %s323
      %p335 = scmp.eq.s32.totalorder %s39, 3
      %p336 = por %p334, %p335
      %p338 = scmp.ne.s32.totalorder %s323, %s337
      %p339 = scmp.eq.s32.totalorder %s39, 0
      %p340 = por %p338, %p339
      %s341 = ssub.s32 %s41, %s48
      %p342 = scmp.eq.s32.totalorder %s341, 0
      %s344 = sadd.s32 %s343, 1
      %s345 = scalar_select %p342, %s343, %s344
      %p348 = pneg %p342
      %p349 = scmp.eq.s32.totalorder %s33, 3
      %p350 = por %p348, %p349
      %p351 = scmp.ne.s32.totalorder %s343, %s346
      %p352 = scmp.eq.s32.totalorder %s33, 0
      %p353 = por %p351, %p352
      %p354 = scmp.ne.s32.totalorder %s343, %s346
      %p355 = scmp.eq.s32.totalorder %s38, 3
      %p356 = por %p354, %p355
      %p357 = scmp.ne.s32.totalorder %s346, %s347
      %p358 = scmp.eq.s32.totalorder %s38, 0
      %p359 = por %p357, %p358
      %p360 = scmp.ne.s32.totalorder %s346, %s347
      %p361 = scmp.eq.s32.totalorder %s39, 3
      %p362 = por %p360, %p361
      %p364 = scmp.ne.s32.totalorder %s347, %s363
      %p365 = scmp.eq.s32.totalorder %s39, 0
      %p366 = por %p364, %p365
      %s367 = ssub.s32 %s41, %s48
      %p368 = scmp.eq.s32.totalorder %s367, 0
      %s370 = sadd.s32 %s369, 1
      %s371 = scalar_select %p368, %s369, %s370
      %p374 = pneg %p368
      %p375 = scmp.eq.s32.totalorder %s33, 3
      %p376 = por %p374, %p375
      %p377 = scmp.ne.s32.totalorder %s369, %s372
      %p378 = scmp.eq.s32.totalorder %s33, 0
      %p379 = por %p377, %p378
      %p380 = scmp.ne.s32.totalorder %s369, %s372
      %p381 = scmp.eq.s32.totalorder %s38, 3
      %p382 = por %p380, %p381
      %p383 = scmp.ne.s32.totalorder %s372, %s373
      %p384 = scmp.eq.s32.totalorder %s38, 0
      %p385 = por %p383, %p384
      %p386 = scmp.ne.s32.totalorder %s372, %s373
      %p387 = scmp.eq.s32.totalorder %s39, 3
      %p388 = por %p386, %p387
      %p390 = scmp.ne.s32.totalorder %s373, %s389
      %p391 = scmp.eq.s32.totalorder %s39, 0
      %p392 = por %p390, %p391
      %p393 = scmp.le.s32.totalorder 1, %s33
      %p394 = scmp.lt.s32.totalorder %s33, 5
      %p395 = pnand %p393, %p394
      %p396 = pneg %p395
      // Predicated region
      $region9: #{multi_head_attention_ca.1} parent=5 // pred_check
        _
      $region10: #{multi_head_attention_ca.1} parent=5 // pred_check_branch
        %398 = sbr.rel (%p395) target = $region12
      $region11: #{multi_head_attention_ca.1} parent=5 // pred_region
        %s399 = ssub.s32 %s33, 1
        // Predicated region
        $region13: #{multi_head_attention_ca.1} parent=11 // pred_check
          %p400 = pneg %p144
        $region14: #{multi_head_attention_ca.1} parent=11 // pred_check_branch
          %402 = sbr.rel (%p400) target = $region16
        $region15: #{multi_head_attention_ca.1} parent=11 // pred_region
          %404 = vsyncadd [#allocation8], 0
          %s405 = sshll.u32 %s3, 4
          %s406 = int_to_ptr.hbm [resolvable:$true] %s405
          %s407 = sshll.u32 [#allocation7], 4
          %s408 = int_to_ptr.vmem [resolvable:$true] %s407
          %413 = dma.hbm_to_vmem [thread:$0]  %s406, 128, %s408, [#allocation8], 64, 64, 4
        $region16: #{multi_head_attention_ca.1} parent=11 // pred_fallthru
          _
        // Predicated region
        $region17: #{multi_head_attention_ca.1} parent=11 // pred_check
          %p414 = pneg %p165
        $region18: #{multi_head_attention_ca.1} parent=11 // pred_check_branch
          %416 = sbr.rel (%p414) target = $region20
        $region19: #{multi_head_attention_ca.1} parent=11 // pred_region
          %418 = vsyncadd [#allocation8], 0
          %s420 = sshll.u32 %s4, 4
          %s421 = int_to_ptr.hbm [resolvable:$true] %s420
          %s422 = sshll.u32 [#allocation9], 4
          %s423 = int_to_ptr.vmem [resolvable:$true] %s422
          %425 = dma.hbm_to_vmem [thread:$0]  %s421, 16, %s423, [#allocation8]
        $region20: #{multi_head_attention_ca.1} parent=11 // pred_fallthru
          _
        // Predicated region
        $region21: #{multi_head_attention_ca.1} parent=11 // pred_check
          %p426 = pneg %p186
        $region22: #{multi_head_attention_ca.1} parent=11 // pred_check_branch
          %428 = sbr.rel (%p426) target = $region24
        $region23: #{multi_head_attention_ca.1} parent=11 // pred_region
          %430 = vsyncadd [#allocation11], 0
          %s431 = sshll.u32 %s5, 4
          %s432 = int_to_ptr.hbm [resolvable:$true] %s431
          %s433 = sshll.u32 [#allocation10], 4
          %s434 = int_to_ptr.vmem [resolvable:$true] %s433
          %439 = dma.hbm_to_vmem [thread:$0]  %s432, 128, %s434, [#allocation11], 64, 64, 4
        $region24: #{multi_head_attention_ca.1} parent=11 // pred_fallthru
          _
        // Predicated region
        $region25: #{multi_head_attention_ca.1} parent=11 // pred_check
          %p440 = pneg %p207
        $region26: #{multi_head_attention_ca.1} parent=11 // pred_check_branch
          %442 = sbr.rel (%p440) target = $region28
        $region27: #{multi_head_attention_ca.1} parent=11 // pred_region
          %444 = vsyncadd [#allocation11], 0
          %s446 = sshll.u32 %s6, 4
          %s447 = int_to_ptr.hbm [resolvable:$true] %s446
          %s448 = sshll.u32 [#allocation12], 4
          %s449 = int_to_ptr.vmem [resolvable:$true] %s448
          %451 = dma.hbm_to_vmem [thread:$0]  %s447, 16, %s449, [#allocation11]
        $region28: #{multi_head_attention_ca.1} parent=11 // pred_fallthru
          _
        // Predicated region
        $region29: #{multi_head_attention_ca.1} parent=11 // pred_check
          %p452 = pneg %p228
        $region30: #{multi_head_attention_ca.1} parent=11 // pred_check_branch
          %454 = sbr.rel (%p452) target = $region32
        $region31: #{multi_head_attention_ca.1} parent=11 // pred_region
          _
        $region32: #{multi_head_attention_ca.1} parent=11 // pred_fallthru
          _
        // Predicated region
        $region33: #{multi_head_attention_ca.1} parent=11 // pred_check
          %p455 = pneg %p249
        $region34: #{multi_head_attention_ca.1} parent=11 // pred_check_branch
          %457 = sbr.rel (%p455) target = $region36
        $region35: #{multi_head_attention_ca.1} parent=11 // pred_region
          %459 = vsyncadd [#allocation14], 0
          %s461 = sshll.u32 %s8, 4
          %s462 = int_to_ptr.hbm [resolvable:$true] %s461
          %s463 = sshll.u32 [#allocation13], 4
          %s464 = int_to_ptr.vmem [resolvable:$true] %s463
          %466 = dma.hbm_to_vmem [thread:$0]  %s462, 16, %s464, [#allocation14]
        $region36: #{multi_head_attention_ca.1} parent=11 // pred_fallthru
          _
        // Predicated region
        $region37: #{multi_head_attention_ca.1} parent=11 // pred_check
          %p467 = pneg %p270
        $region38: #{multi_head_attention_ca.1} parent=11 // pred_check_branch
          %469 = sbr.rel (%p467) target = $region40
        $region39: #{multi_head_attention_ca.1} parent=11 // pred_region
          _
        $region40: #{multi_head_attention_ca.1} parent=11 // pred_fallthru
          _
        // Predicated region
        $region41: #{multi_head_attention_ca.1} parent=11 // pred_check
          %p470 = pneg %p291
        $region42: #{multi_head_attention_ca.1} parent=11 // pred_check_branch
          %472 = sbr.rel (%p470) target = $region44
        $region43: #{multi_head_attention_ca.1} parent=11 // pred_region
          _
        $region44: #{multi_head_attention_ca.1} parent=11 // pred_fallthru
          _
        // Predicated region
        $region45: #{multi_head_attention_ca.1} parent=11 // pred_check
          %p473 = pneg %p312
        $region46: #{multi_head_attention_ca.1} parent=11 // pred_check_branch
          %475 = sbr.rel (%p473) target = $region48
        $region47: #{multi_head_attention_ca.1} parent=11 // pred_region
          _
        $region48: #{multi_head_attention_ca.1} parent=11 // pred_fallthru
          _
        // Predicated region
        $region49: #{multi_head_attention_ca.1} parent=11 // pred_check
          %p476 = pneg %p333
        $region50: #{multi_head_attention_ca.1} parent=11 // pred_check_branch
          %478 = sbr.rel (%p476) target = $region52
        $region51: #{multi_head_attention_ca.1} parent=11 // pred_region
          _
        $region52: #{multi_head_attention_ca.1} parent=11 // pred_fallthru
          _
      $region12: #{multi_head_attention_ca.1} parent=5 // pred_fallthru
        _
      %p479 = scmp.lt.s32.totalorder %s33, 4
      // Predicated region
      $region53: #{multi_head_attention_ca.1} parent=5 // pred_check
        %p480 = pneg %p479
      $region54: #{multi_head_attention_ca.1} parent=5 // pred_check_branch
        %482 = sbr.rel (%p480) target = $region56
      $region55: #{multi_head_attention_ca.1} parent=5 // pred_region
        // Predicated region
        $region57: #{multi_head_attention_ca.1} parent=55 // pred_check
          %p483 = pneg %p65
        $region58: #{multi_head_attention_ca.1} parent=55 // pred_check_branch
          %485 = sbr.rel (%p483) target = $region60
        $region59: #{multi_head_attention_ca.1} parent=55 // pred_region
          %p486 = scmp.lt.s32.totalorder %s41, 1
          %s487 = scalar_select %p486, %s41, 1
          %s488 = smul.addr %s487, 8
          %s489 = scalar_lea.vmem %s0, %s488
        $region60: #{multi_head_attention_ca.1} parent=55 // pred_fallthru
          _
        // Predicated region
        $region61: #{multi_head_attention_ca.1} parent=55 // pred_check
          %p490 = pneg %p91
        $region62: #{multi_head_attention_ca.1} parent=55 // pred_check_branch
          %492 = sbr.rel (%p490) target = $region64
        $region63: #{multi_head_attention_ca.1} parent=55 // pred_region
          %p493 = scmp.lt.s32.totalorder %s41, 1
          %s494 = scalar_select %p493, %s41, 1
          %s495 = smul.addr %s494, 8
          %s496 = scalar_lea.vmem %s1, %s495
        $region64: #{multi_head_attention_ca.1} parent=55 // pred_fallthru
          _
        // Predicated region
        $region65: #{multi_head_attention_ca.1} parent=55 // pred_check
          %p497 = pneg %p117
        $region66: #{multi_head_attention_ca.1} parent=55 // pred_check_branch
          %499 = sbr.rel (%p497) target = $region68
        $region67: #{multi_head_attention_ca.1} parent=55 // pred_region
          %s500 = sand.u32 %s107, 1
          %s501 = scalar_lea.sflag [#allocation5], %s500
          %s502 = sand.u32 %s107, 1
          %s503 = smul.addr %s502, 8
          %s504 = scalar_lea.vmem [#allocation4], %s503
          %506 = vsyncadd %s501, 0
          %s507 = smul.addr %s41, 8
          %s508 = scalar_lea.hbm %s2, %s507
          %s510 = sshll.u32 %s508, 4
          %s511 = int_to_ptr.hbm [resolvable:$true] %s510
          %s512 = sshll.u32 %s504, 4
          %s513 = int_to_ptr.vmem [resolvable:$true] %s512
          %515 = dma.hbm_to_vmem [thread:$0]  %s511, 128, %s513, %s501
        $region68: #{multi_head_attention_ca.1} parent=55 // pred_fallthru
          _
      $region56: #{multi_head_attention_ca.1} parent=5 // pred_fallthru
        _
      %p516 = scmp.le.s32.totalorder 1, %s33
      %p517 = scmp.lt.s32.totalorder %s33, 5
      %p518 = pnand %p516, %p517
      %p519 = pneg %p518
      // Predicated region
      $region69: #{multi_head_attention_ca.1} parent=5 // pred_check
        _
      $region70: #{multi_head_attention_ca.1} parent=5 // pred_check_branch
        %521 = sbr.rel (%p518) target = $region72
      $region71: #{multi_head_attention_ca.1} parent=5 // pred_region
        %s522 = ssub.s32 %s33, 1
        %s523 = sand.u32 %s110, 1
        %s524 = scalar_lea.sflag [#allocation5], %s523
        %s525 = sand.u32 %s110, 1
        %s526 = smul.addr %s525, 8
        %s527 = scalar_lea.vmem [#allocation4], %s526
        // Predicated region
        $region73: #{multi_head_attention_ca.1} parent=71 // pred_check
          %p528 = pneg %p123
        $region74: #{multi_head_attention_ca.1} parent=71 // pred_check_branch
          %530 = sbr.rel (%p528) target = $region76
        $region75: #{multi_head_attention_ca.1} parent=71 // pred_region
          %532 = dma.done %s524, 128
        $region76: #{multi_head_attention_ca.1} parent=71 // pred_fallthru
          _
        // Predicated region
        $region77: #{multi_head_attention_ca.1} parent=71 // pred_check
          %p533 = pneg %p144
        $region78: #{multi_head_attention_ca.1} parent=71 // pred_check_branch
          %535 = sbr.rel (%p533) target = $region80
        $region79: #{multi_head_attention_ca.1} parent=71 // pred_region
          %537 = dma.done [#allocation8], 128
        $region80: #{multi_head_attention_ca.1} parent=71 // pred_fallthru
          _
        // Predicated region
        $region81: #{multi_head_attention_ca.1} parent=71 // pred_check
          %p538 = pneg %p165
        $region82: #{multi_head_attention_ca.1} parent=71 // pred_check_branch
          %540 = sbr.rel (%p538) target = $region84
        $region83: #{multi_head_attention_ca.1} parent=71 // pred_region
          %542 = dma.done [#allocation8], 16
        $region84: #{multi_head_attention_ca.1} parent=71 // pred_fallthru
          _
        // Predicated region
        $region85: #{multi_head_attention_ca.1} parent=71 // pred_check
          %p543 = pneg %p186
        $region86: #{multi_head_attention_ca.1} parent=71 // pred_check_branch
          %545 = sbr.rel (%p543) target = $region88
        $region87: #{multi_head_attention_ca.1} parent=71 // pred_region
          %547 = dma.done [#allocation11], 128
        $region88: #{multi_head_attention_ca.1} parent=71 // pred_fallthru
          _
        // Predicated region
        $region89: #{multi_head_attention_ca.1} parent=71 // pred_check
          %p548 = pneg %p207
        $region90: #{multi_head_attention_ca.1} parent=71 // pred_check_branch
          %550 = sbr.rel (%p548) target = $region92
        $region91: #{multi_head_attention_ca.1} parent=71 // pred_region
          %552 = dma.done [#allocation11], 16
        $region92: #{multi_head_attention_ca.1} parent=71 // pred_fallthru
          _
        // Predicated region
        $region93: #{multi_head_attention_ca.1} parent=71 // pred_check
          %p553 = pneg %p249
        $region94: #{multi_head_attention_ca.1} parent=71 // pred_check_branch
          %555 = sbr.rel (%p553) target = $region96
        $region95: #{multi_head_attention_ca.1} parent=71 // pred_region
          %557 = dma.done [#allocation14], 16
        $region96: #{multi_head_attention_ca.1} parent=71 // pred_fallthru
          _
        %p558 = scmp.lt.s32.totalorder %s43, 1
        %s559 = scalar_select %p558, %s43, 1
        %s560 = smul.addr %s559, 8
        %s561 = scalar_lea.vmem %s0, %s560
        %p562 = pneg %p71
        %p563 = pneg %p68
        %p564 = scmp.lt.s32.totalorder %s43, 1
        %s565 = scalar_select %p564, %s43, 1
        %s566 = smul.addr %s565, 8
        %s567 = scalar_lea.vmem %s1, %s566
        %p568 = pneg %p97
        %p569 = pneg %p94
        %s570 = sand.u32 %s110, 1
        %s571 = scalar_lea.sflag [#allocation5], %s570
        %s572 = sand.u32 %s110, 1
        %s573 = smul.addr %s572, 8
        %s574 = scalar_lea.vmem [#allocation4], %s573
        %p575 = pneg %p123
        %p576 = pneg %p120
        %p577 = pneg %p144
        %p578 = pneg %p141
        %p579 = pneg %p165
        %p580 = pneg %p162
        %p581 = pneg %p186
        %p582 = pneg %p183
        %p583 = pneg %p207
        %p584 = pneg %p204
        %p585 = pneg %p228
        %p586 = pneg %p225
        %p587 = pneg %p249
        %p588 = pneg %p246
        %p589 = pneg %p270
        %p590 = pneg %p267
        %p591 = pneg %p291
        %p592 = pneg %p288
        %p593 = pneg %p312
        %p594 = pneg %p309
        %p595 = pneg %p333
        %p596 = pneg %p330
        %p597 = pneg %p359
        %p598 = pneg %p356
        %s599 = sand.u32 %s346, 1
        %s600 = scalar_lea.sflag [#allocation6], %s599
        %s601 = sand.u32 %s346, 1
        %s602 = smul.addr %s601, 8
        %s603 = scalar_lea.vmem [#allocation15], %s602
        %p604 = pneg %p385
        %p605 = pneg %p382
        %s606 = sand.u32 %s372, 1
        %s607 = scalar_lea.sflag [#allocation17], %s606
        %s608 = sand.u32 %s372, 1
        %s609 = smul.addr %s608, 8
        %s610 = scalar_lea.vmem [#allocation16], %s609
        %p611 = scmp.lt.s32.totalorder %s43, 1
        %s612 = scalar_select %p611, %s43, 1
        %s613 = smul.addr %s612, 8
        %s614 = scalar_lea.vmem %s0, %s613
        %p615 = scmp.lt.s32.totalorder %s43, 1
        %s616 = scalar_select %p615, %s43, 1
        %s617 = smul.addr %s616, 8
        %s618 = scalar_lea.vmem %s1, %s617
        %v620 = vld [vmem:[%s614] sm:$0xff]
        %v621 = vpack.c.bf16 %v620, %v620
        %v622 = vld [vmem:[#allocation7] sm:$0xf]
        %v623 = vld [vmem:[#allocation7 + $0x4] sm:$0xf]
        %v624 = vld [vmem:[#allocation9] sm:$0x1]
        %v626 = vperm.slane %v624, 0
        %v630 = vunpack.c.l.b16 %v622
        %v631 = vunpack.c.l.b16 %v623
        %v632 = vpack.c.b16 %v631, %v630
        %vm634 = vcmask 130048
        %v636 = vsel %vm634, %v621, 0
        %638 = vmatpush.bf16.msra.mxu0 0
        %639 = vmatpush.bf16.msra.mxu0 0
        %640 = vmatpush.bf16.msra.mxu0 0
        %641 = vmatpush.bf16.msra.mxu0 0
        %642 = vmatpush.bf16.msra.mxu0 0
        %643 = vmatpush.bf16.msra.mxu0 0
        %644 = vmatpush.bf16.msra.mxu0 0
        %645 = vmatpush.bf16.msra.mxu0 %v632
        %646 = vmatmul.bf16.gmra.mxu0 %v636
        %v647 = vpop.f32.mrf.mxu0
        %v648 = vadd.f32 %v626, %v647
        %v649 = vpop.f32.mrf.mxu0
        %650 = vdwg.mxu0
        %v651 = vld [vmem:[%s618] sm:$0xff]
        %v652 = vpack.c.bf16 %v651, %v651
        %v653 = vld [vmem:[#allocation10] sm:$0xf]
        %v654 = vld [vmem:[#allocation10 + $0x4] sm:$0xf]
        %v655 = vld [vmem:[#allocation12] sm:$0x1]
        %v657 = vperm.slane %v655, 0
        %v661 = vunpack.c.l.b16 %v653
        %v662 = vunpack.c.l.b16 %v654
        %v663 = vpack.c.b16 %v662, %v661
        %v666 = vsel %vm634, %v652, 0
        %668 = vmatpush.bf16.msra.mxu0 0
        %669 = vmatpush.bf16.msra.mxu0 0
        %670 = vmatpush.bf16.msra.mxu0 0
        %671 = vmatpush.bf16.msra.mxu0 0
        %672 = vmatpush.bf16.msra.mxu0 0
        %673 = vmatpush.bf16.msra.mxu0 0
        %674 = vmatpush.bf16.msra.mxu0 0
        %675 = vmatpush.bf16.msra.mxu0 %v663
        %676 = vmatmul.bf16.gmra.mxu0 %v666
        %v677 = vpop.f32.mrf.mxu0
        %v678 = vadd.f32 %v657, %v677
        %v679 = vpop.f32.mrf.mxu0
        %680 = vdwg.mxu0
        %v681 = vld [vmem:[%s527] sm:$0xff]
        %v682 = vpack.c.bf16 %v681, %v681
        %v683 = vld [vmem:[%s7] sm:$0xf]
        %v684 = vld [vmem:[%s7 + $0x4] sm:$0xf]
        %v685 = vld [vmem:[#allocation13] sm:$0x1]
        %v687 = vperm.slane %v685, 0
        %v691 = vunpack.c.l.b16 %v683
        %v692 = vunpack.c.l.b16 %v684
        %v693 = vpack.c.b16 %v692, %v691
        %v696 = vsel %vm634, %v682, 0
        %698 = vmatpush.bf16.msra.mxu0 0
        %699 = vmatpush.bf16.msra.mxu0 0
        %700 = vmatpush.bf16.msra.mxu0 0
        %701 = vmatpush.bf16.msra.mxu0 0
        %702 = vmatpush.bf16.msra.mxu0 0
        %703 = vmatpush.bf16.msra.mxu0 0
        %704 = vmatpush.bf16.msra.mxu0 0
        %705 = vmatpush.bf16.msra.mxu0 %v693
        %706 = vmatmul.bf16.gmra.mxu0 %v696
        %v707 = vpop.f32.mrf.mxu0
        %v708 = vadd.f32 %v687, %v707
        %v709 = vpop.f32.mrf.mxu0
        %710 = vdwg.mxu0
        %v711 = vpack.c.bf16 %v648, %v648
        %v712 = vpack.c.bf16 %v678, %v678
        %vm713 = vcmask 261120
        %v715 = vsel %vm713, %v711, 0
        %v718 = vsel %vm713, %v712, 0
        %720 = vmatpush.bf16.xpose.msra.mxu0 0
        %721 = vmatpush.bf16.xpose.msra.mxu0 0
        %722 = vmatpush.bf16.xpose.msra.mxu0 0
        %723 = vmatpush.bf16.xpose.msra.mxu0 0
        %724 = vmatpush.bf16.xpose.msra.mxu0 0
        %725 = vmatpush.bf16.xpose.msra.mxu0 0
        %726 = vmatpush.bf16.xpose.msra.mxu0 0
        %727 = vmatpush.bf16.xpose.msra.mxu0 %v718
        %728 = vmatmul.bf16.gmra.mxu0 %v715
        %v729 = vpop.f32.mrf.mxu0
        %v730 = vadd.f32 0.0, %v729
        %v731 = vpop.f32.mrf.mxu0
        %732 = vdwg.mxu0
        %v733 = vmul.f32 %v730, 0.17677669
        %vm734 = vcmask 64512
        %v735 = vsel %vm734, %v733, -inf
        %736 = vmax.xlane.f32.xlu0 %v735
        %v737 = vpop.xlane.xlu0 %736
        %v738 = vsub.f32 %v733, %v737
        %v739 = vmul.f32 %v738, 1.442695
        %v740 = vpow.pop %v739
        %v741 = vsel %vm734, %v740, 0.0
        %742 = vadd.xlane.f32.xlu0 %v741
        %v743 = vpop.xlane.xlu0 %742
        %v744 = vrcp.pop %v743
        %v745 = vmul.f32 %v743, %v744
        %v746 = vsub.f32 2.0, %v745
        %v747 = vmul.f32 %v744, %v746
        %v748 = vmul.f32 %v740, %v747
        %749 = vst.msk [vmem:[%s610] sm:$0xff] %vm734, %v748
        %v750 = vpack.c.bf16 %v748, %v748
        %v751 = vpack.c.bf16 %v708, %v708
        %v753 = vsel %vm734, %v750, 0
        %vm755 = vcmask 1043456
        %v757 = vsel %vm755, %v751, 0
        %759 = vmatpush.bf16.msra.mxu0 0
        %760 = vmatpush.bf16.msra.mxu0 0
        %761 = vmatpush.bf16.msra.mxu0 0
        %762 = vmatpush.bf16.msra.mxu0 0
        %763 = vmatpush.bf16.msra.mxu0 0
        %764 = vmatpush.bf16.msra.mxu0 0
        %765 = vmatpush.bf16.msra.mxu0 0
        %766 = vmatpush.bf16.msra.mxu0 %v757
        %767 = vmatmul.bf16.gmra.mxu0 %v753
        %v768 = vpop.f32.mrf.mxu0
        %v769 = vadd.f32 0.0, %v768
        %v770 = vpop.f32.mrf.mxu0
        %771 = vdwg.mxu0
        %v772 = vpack.c.bf16 %v769, %v769
        %v773 = vld [vmem:[%s9] sm:$0xf]
        %v774 = vld [vmem:[%s9 + $0x4] sm:$0xf]
        %v775 = vld [vmem:[%s9 + $0x8] sm:$0xf]
        %v776 = vld [vmem:[%s9 + $0xc] sm:$0xf]
        %v777 = vld [vmem:[%s10] sm:$0x1]
        %v779 = vperm.slane %v777, 0
        %v785 = vunpack.c.l.b16 %v773
        %v786 = vunpack.c.l.b16 %v774
        %v787 = vunpack.c.l.b16 %v775
        %v788 = vunpack.c.l.b16 %v776
        %v789 = vpack.c.b16 %v786, %v785
        %v790 = vpack.c.b16 %v788, %v787
        %v794 = vsel %vm713, %v772, 0
        %796 = vmatpush.bf16.msra.mxu0 0
        %797 = vmatpush.bf16.msra.mxu0 0
        %798 = vmatpush.bf16.msra.mxu0 0
        %799 = vmatpush.bf16.msra.mxu0 0
        %800 = vmatpush.bf16.msra.mxu0 0
        %801 = vmatpush.bf16.msra.mxu0 0
        %802 = vmatpush.bf16.msra.mxu0 %v790
        %803 = vmatpush.bf16.msra.mxu0 %v789
        %804 = vmatmul.bf16.gmra.mxu0 %v794
        %v805 = vpop.f32.mrf.mxu0
        %v806 = vadd.f32 %v779, %v805
        %v807 = vpop.f32.mrf.mxu0
        %808 = vdwg.mxu0
        %p809 = scmp.eq.s32.totalorder %s42, 0
        %p810 = scmp.eq.s32.totalorder %s43, 0
        %p811 = pnand %p809, %p810
        %p812 = pneg %p811
        // Predicated region
        $region97: #{multi_head_attention_ca.1} parent=71 // pred_check
          _
        $region98: #{multi_head_attention_ca.1} parent=71 // pred_check_branch
          %814 = sbr.rel (%p811) target = $region100
        $region99: #{multi_head_attention_ca.1} parent=71 // pred_region
          %vm815 = vcmask 7168
          %816 = vst.msk [vmem:[#allocation2] sm:$0xff] %vm815, 0.0
          %817 = vst.msk [vmem:[#allocation3] sm:$0xff] %vm815, 0.0
        $region100: #{multi_head_attention_ca.1} parent=71 // pred_fallthru
          _
        // Predicated region
        $region101: #{multi_head_attention_ca.1} parent=71 // pred_check
          %p818 = pneg %p809
        $region102: #{multi_head_attention_ca.1} parent=71 // pred_check_branch
          %820 = sbr.rel (%p818) target = $region104
        $region103: #{multi_head_attention_ca.1} parent=71 // pred_region
          %v821 = vld [vmem:[#allocation2] sm:$0xff]
          %v822 = vsel %vm634, %v806, 0.0
          %823 = vadd.xlane.f32.xlu0 %v822
          %v824 = vpop.xlane.xlu0 %823
          %v825 = vadd.f32 %v821, %v824
          %vm826 = vcmask 7168
          %827 = vst.msk [vmem:[#allocation2] sm:$0xff] %vm826, %v825
          %v828 = vld [vmem:[#allocation3] sm:$0xff]
          %v829 = vmul.f32 %v806, %v806
          %v830 = vsel %vm634, %v829, 0.0
          %831 = vadd.xlane.f32.xlu0 %v830
          %v832 = vpop.xlane.xlu0 %831
          %v833 = vadd.f32 %v828, %v832
          %834 = vst.msk [vmem:[#allocation3] sm:$0xff] %vm826, %v833
          %835 = vst.msk [vmem:[%s603] sm:$0xff] %vm634, %v806
        $region104: #{multi_head_attention_ca.1} parent=71 // pred_fallthru
          _
        %p836 = scmp.eq.s32.totalorder %s42, 1
        // Predicated region
        $region105: #{multi_head_attention_ca.1} parent=71 // pred_check
          %p837 = pneg %p836
        $region106: #{multi_head_attention_ca.1} parent=71 // pred_check_branch
          %839 = sbr.rel (%p837) target = $region108
        $region107: #{multi_head_attention_ca.1} parent=71 // pred_region
          %v840 = vld [vmem:[#allocation2] sm:$0xff]
          %v841 = vmul.f32 %v840, 0.03125
          %v842 = vld [vmem:[#allocation3] sm:$0xff]
          %v843 = vmul.f32 %v842, 0.03125
          %v844 = vmul.f32 %v841, %v841
          %v845 = vsub.f32 %v843, %v844
          %v846 = vadd.f32 %v845, 1e-05
          %v847 = vrsqrt.pop %v846
          %v848 = vmul.f32 %v847, %v846
          %v849 = vmul.f32 %v848, %v847
          %v850 = vmul.f32 0.5, %v849
          %v851 = vsub.f32 1.5, %v850
          %v852 = vmul.f32 %v847, %v851
          %vm853 = vweird.f32 %v846
          %vm854 = vweird.f32 %v847
          %vm855 = vmor %vm853, %vm854
          %v856 = vsel %vm855, %v847, %v852
          %858 = vset.pattern.permute.xlu0 0
          %859 = vperm.xlu0 %858, %v841
          %v860 = vpop.permute.xlu0 %859
          %v862 = vsub.f32 %v806, %v860
          %864 = vset.pattern.permute.xlu0 0
          %865 = vperm.xlu0 %864, %v856
          %v866 = vpop.permute.xlu0 %865
          %v868 = vmul.f32 %v862, %v866
          %v869 = vld [vmem:[%s11] sm:$0xff]
          %871 = vset.pattern.permute.xlu0 0
          %872 = vperm.xlu0 %871, %v869
          %v873 = vpop.permute.xlu0 %872
          %v875 = vmul.f32 %v868, %v873
          %v876 = vld [vmem:[%s12] sm:$0xff]
          %878 = vset.pattern.permute.xlu0 0
          %879 = vperm.xlu0 %878, %v876
          %v880 = vpop.permute.xlu0 %879
          %v882 = vadd.f32 %v875, %v880
          %v883 = vmax.f32 %v882, 0.0
          %v884 = vld [vmem:[%s527] sm:$0xff]
          %v885 = vadd.f32 %v884, %v883
          %886 = vst.msk [vmem:[%s603] sm:$0xff] %vm634, %v885
        $region108: #{multi_head_attention_ca.1} parent=71 // pred_fallthru
          _
        %s887 = sand.u32 %s346, 1
        %s888 = scalar_lea.sflag [#allocation6], %s887
        %s889 = sand.u32 %s346, 1
        %s890 = smul.addr %s889, 8
        %s891 = scalar_lea.vmem [#allocation15], %s890
        %s892 = sand.u32 %s372, 1
        %s893 = scalar_lea.sflag [#allocation17], %s892
        %s894 = sand.u32 %s372, 1
        %s895 = smul.addr %s894, 8
        %s896 = scalar_lea.vmem [#allocation16], %s895
        // Predicated region
        $region109: #{multi_head_attention_ca.1} parent=71 // pred_check
          %p897 = pneg %p356
        $region110: #{multi_head_attention_ca.1} parent=71 // pred_check_branch
          %899 = sbr.rel (%p897) target = $region112
        $region111: #{multi_head_attention_ca.1} parent=71 // pred_region
          %901 = vsyncadd %s888, 0
          %s902 = smul.addr %s43, 8
          %s903 = scalar_lea.hbm %s13, %s902
          %s905 = sshll.u32 %s891, 4
          %s906 = int_to_ptr.vmem [resolvable:$true] %s905
          %s907 = sshll.u32 %s903, 4
          %s908 = int_to_ptr.hbm [resolvable:$true] %s907
          %910 = dma.vmem_to_hbm [thread:$0]  %s906, 128, %s908, %s888
        $region112: #{multi_head_attention_ca.1} parent=71 // pred_fallthru
          _
        // Predicated region
        $region113: #{multi_head_attention_ca.1} parent=71 // pred_check
          %p911 = pneg %p382
        $region114: #{multi_head_attention_ca.1} parent=71 // pred_check_branch
          %913 = sbr.rel (%p911) target = $region116
        $region115: #{multi_head_attention_ca.1} parent=71 // pred_region
          %915 = vsyncadd %s893, 0
          %s916 = smul.addr %s43, 8
          %s917 = scalar_lea.hbm %s14, %s916
          %s919 = sshll.u32 %s896, 4
          %s920 = int_to_ptr.vmem [resolvable:$true] %s919
          %s921 = sshll.u32 %s917, 4
          %s922 = int_to_ptr.hbm [resolvable:$true] %s921
          %924 = dma.vmem_to_hbm [thread:$0]  %s920, 128, %s922, %s893
        $region116: #{multi_head_attention_ca.1} parent=71 // pred_fallthru
          _
      $region72: #{multi_head_attention_ca.1} parent=5 // pred_fallthru
        _
      %p925 = scmp.le.s32.totalorder 2, %s33
      // Predicated region
      $region117: #{multi_head_attention_ca.1} parent=5 // pred_check
        %p926 = pneg %p925
      $region118: #{multi_head_attention_ca.1} parent=5 // pred_check_branch
        %928 = sbr.rel (%p926) target = $region120
      $region119: #{multi_head_attention_ca.1} parent=5 // pred_region
        %s929 = ssub.s32 %s33, 2
        // Predicated region
        $region121: #{multi_head_attention_ca.1} parent=119 // pred_check
          %p930 = pneg %p362
        $region122: #{multi_head_attention_ca.1} parent=119 // pred_check_branch
          %932 = sbr.rel (%p930) target = $region124
        $region123: #{multi_head_attention_ca.1} parent=119 // pred_region
          %s933 = sand.u32 %s347, 1
          %s934 = scalar_lea.sflag [#allocation6], %s933
          %s935 = sand.u32 %s347, 1
          %s936 = smul.addr %s935, 8
          %s937 = scalar_lea.vmem [#allocation15], %s936
          %939 = dma.done %s934, 128
        $region124: #{multi_head_attention_ca.1} parent=119 // pred_fallthru
          _
        // Predicated region
        $region125: #{multi_head_attention_ca.1} parent=119 // pred_check
          %p940 = pneg %p388
        $region126: #{multi_head_attention_ca.1} parent=119 // pred_check_branch
          %942 = sbr.rel (%p940) target = $region128
        $region127: #{multi_head_attention_ca.1} parent=119 // pred_region
          %s943 = sand.u32 %s373, 1
          %s944 = scalar_lea.sflag [#allocation17], %s943
          %s945 = sand.u32 %s373, 1
          %s946 = smul.addr %s945, 8
          %s947 = scalar_lea.vmem [#allocation16], %s946
          %949 = dma.done %s944, 128
        $region128: #{multi_head_attention_ca.1} parent=119 // pred_fallthru
          _
      $region120: #{multi_head_attention_ca.1} parent=5 // pred_fallthru
        _
    $region6: #{multi_head_attention_ca.1} parent=1 // loop_footer
      %s37 = sadd.s32 1, %s33
    $region7: #{multi_head_attention_ca.1} parent=1 // loop_footer_branch
      %32 = sbr.rel target = $region3
    $region8: #{multi_head_attention_ca.1} parent=1 // loop_exit
      _
    %950 = vsyncpa [#allocation5], 1
    %s951 = scalar_lea.sflag [#allocation5], 1
    %952 = vsyncpa %s951, 1
    %953 = vsyncpa [#allocation8], 1
    %954 = vsyncpa [#allocation11], 1
    %955 = vsyncpa [#allocation14], 1
    %956 = vsyncpa [#allocation6], 1
    %s957 = scalar_lea.sflag [#allocation6], 1
    %958 = vsyncpa %s957, 1
    %959 = vsyncpa [#allocation17], 1
    %s960 = scalar_lea.sflag [#allocation17], 1
    %961 = vsyncpa %s960, 1

</llo_original>
